<compile_context>
chip_gen: v6e
topology: v6e:2x2x1
jax: 0.10.0
libtpu: 0.0.40
codegen_flags: <defaults>
</compile_context>

<pallas_src>
import functools

import jax
import jax.numpy as jnp
from jax import lax
from jax.experimental import pallas as pl
from jax.experimental.pallas import tpu as pltpu


def _psan_kernel(x_ref, scale_ref, shift_ref, o_ref, *, eps):
    """Per-(batch,feature) mean/unbiased-var over axis 1, normalize, affine."""
    # Compute in f32 regardless of I/O dtype (exact mean/var accumulation).
    x = x_ref[...].astype(jnp.float32)                      # (TB, S, TD)
    s = x.shape[1]
    mean = jnp.sum(x, axis=1, keepdims=True) * (1.0 / s)    # (TB, 1, TD)
    centered = x - mean
    # torch.var_mean default is unbiased (correction = 1); two-pass (centered)
    # form kept on purpose for numerical safety with eps=1e-8.
    var = jnp.sum(centered * centered, axis=1, keepdims=True) * (1.0 / (s - 1))
    inv_std = lax.rsqrt(var + eps)                          # EUP slot, ~free
    # Fold the affine:  out = x * a + off,  a = inv_std*scale, off = shift - mean*a
    a = inv_std * scale_ref[...].astype(jnp.float32)        # (TB, 1, TD)
    off = shift_ref[...].astype(jnp.float32) - mean * a     # (TB, 1, TD)
    o_ref[...] = (x * a + off).astype(o_ref.dtype)


def _divisors(n):
    return [d for d in range(1, n + 1) if n % d == 0]


def _pick_tiles(B, S, D, in_bytes, out_bytes, block_budget_bytes):
    """Pick (tb, td) so resident buffers (2x in + 2x out double buffers + ~2
    block-sized f32 temporaries) stay inside block_budget_bytes, preferring the
    widest lane-dense feature tile (td=D) and the largest batch tile."""
    per_elem = 2 * in_bytes + 2 * out_bytes + 2 * 4
    max_block_elems = max(1, block_budget_bytes // per_elem)

    # Feature tile: prefer td = D; split only if a tb=1 block would not fit and
    # D can be split into multiples of 128 (lane-dense stores, no vst.msk).
    td = D
    if S * D > max_block_elems and D % 128 == 0:
        cands = [d for d in _divisors(D)
                 if d % 128 == 0 and S * d <= max_block_elems]
        if cands:
            td = max(cands)
        else:
            td = min(d for d in _divisors(D) if d % 128 == 0)
    # TODO(synk): if D % 128 != 0 we keep td = D (full-dim block is legal but
    # uses masked stores); padding D to a multiple of 128 in the wrapper would
    # avoid that at the cost of extra plumbing.

    # Batch tile: largest divisor of B whose block still fits the budget.
    fitting = [d for d in _divisors(B) if d * S * td <= max_block_elems]
    tb = max(fitting) if fitting else 1
    return tb, td, per_elem


def structure_aware_norm(x, scale, shift, eps=1e-8, *,
                         block_budget_bytes=24 * 1024 * 1024):
    """x: (B, S, D).  scale/shift: (D,).  Returns (B, S, D) in x.dtype."""
    assert x.ndim == 3, "expected (B, S, D)"
    B, S, D = x.shape
    assert S >= 2, "unbiased variance needs at least 2 elements along dim 1"
    assert scale.shape == (D,) and shift.shape == (D,)

    in_bytes = jnp.dtype(x.dtype).itemsize
    out_bytes = in_bytes
    tb, td, per_elem = _pick_tiles(B, S, D, in_bytes, out_bytes,
                                   block_budget_bytes)

    # Explicit scoped-VMEM limit: safe on all generations (v5e default is only
    # 16 MiB; v7x physical is 64 MiB) and covers pathological no-divisor shapes.
    footprint = per_elem * tb * S * td + 8 * D * 4
    vmem_limit = max(32 * 1024 * 1024, int(footprint * 1.25))

    kernel = functools.partial(_psan_kernel, eps=float(eps))
    # Feature axis outermost so the (1, td) scale/shift blocks stay resident
    # across the inner batch sweep.
    grid = (D // td, B // tb)
    return pl.pallas_call(
        kernel,
        out_shape=jax.ShapeDtypeStruct((B, S, D), x.dtype),
        grid=grid,
        in_specs=[
            pl.BlockSpec((tb, S, td), lambda d, b: (b, 0, d)),
            pl.BlockSpec((1, td), lambda d, b: (0, d)),
            pl.BlockSpec((1, td), lambda d, b: (0, d)),
        ],
        out_specs=pl.BlockSpec((tb, S, td), lambda d, b: (b, 0, d)),
        compiler_params=pltpu.CompilerParams(
            dimension_semantics=("parallel", "parallel"),
            vmem_limit_bytes=vmem_limit),
    )(x, scale.reshape(1, D), shift.reshape(1, D))


def _reference(x, scale, shift, eps=1e-8):
    """Pure-JAX reference matching torch.var_mean(dim=1, keepdim=True)."""
    xf = x.astype(jnp.float32)
    mean = jnp.mean(xf, axis=1, keepdims=True)
    var = jnp.var(xf, axis=1, keepdims=True, ddof=1)   # unbiased, torch default
    std = jnp.sqrt(var + eps)
    return (xf - mean) / std * scale + shift


if __name__ == "__main__":
    EPS = 1e-8
    key = jax.random.PRNGKey(0)
    k1, k2, k3, k4 = jax.random.split(key, 4)

    # Case 1: f32, (B=6, S=8, D=384). Budget-driven picker takes tb=6, td=384
    # -> a single wide lane-dense block, grid (1, 1).
    B, S, D = 6, 8, 384
    x = jax.random.normal(k1, (B, S, D), jnp.float32)
    scale = 1.0 + 0.1 * jax.random.normal(k2, (D,), jnp.float32)
    shift = 0.1 * jax.random.normal(k3, (D,), jnp.float32)

    out = jax.block_until_ready(structure_aware_norm(x, scale, shift, eps=EPS))
    ref = _reference(x, scale, shift, eps=EPS)
    assert out.shape == (B, S, D) and out.dtype == x.dtype
    assert jnp.allclose(out, ref, rtol=1e-4, atol=1e-4), "f32 mismatch"

    # Case 2: same inputs, artificially tiny budget to force the tiled path
    # (picker -> td=128, tb=2, grid (3, 3), still lane-dense stores).
    out_tiled = jax.block_until_ready(
        structure_aware_norm(x, scale, shift, eps=EPS,
                             block_budget_bytes=64 * 1024))
    assert jnp.allclose(out_tiled, ref, rtol=1e-4, atol=1e-4), "tiled mismatch"

    # Case 3: bf16 I/O with f32 compute inside the kernel.
    xb32 = jax.random.normal(k4, (4, 16, 256), jnp.float32)
    xb = xb32.astype(jnp.bfloat16)
    sc = 1.0 + 0.1 * jax.random.normal(k2, (256,), jnp.float32)
    sh = 0.1 * jax.random.normal(k3, (256,), jnp.float32)
    out_b = jax.block_until_ready(structure_aware_norm(xb, sc, sh, eps=EPS))
    ref_b = _reference(xb, sc, sh, eps=EPS)
    assert out_b.dtype == jnp.bfloat16
    assert jnp.allclose(out_b.astype(jnp.float32), ref_b,
                        rtol=3e-2, atol=3e-2), "bf16 mismatch"

    print("KERNEL_OK")
</pallas_src>

<mosaic_0001>
module attributes {stable_mosaic.version = 11 : i64} {
  func.func @_psan_kernel(%arg0: i32, %arg1: i32, %arg2: memref<6x8x384xf32, #tpu.memory_space<vmem>>, %arg3: memref<1x384xf32, #tpu.memory_space<vmem>>, %arg4: memref<1x384xf32, #tpu.memory_space<vmem>>, %arg5: memref<6x8x384xf32, #tpu.memory_space<vmem>>) attributes {dimension_semantics = [#tpu.dimension_semantics<parallel>, #tpu.dimension_semantics<parallel>], iteration_bounds = array<i64: 1, 1>, scalar_prefetch = 0 : i64, scratch_operands = 0 : i64, tpu.core_type = #tpu.core_type<tc>, window_params = [{transform_indices = @transform_0, window_bounds = array<i64: 6, 8, 384>}, {transform_indices = @transform_1, window_bounds = array<i64: 1, 384>}, {transform_indices = @transform_2, window_bounds = array<i64: 1, 384>}, {transform_indices = @transform_3, window_bounds = array<i64: 6, 8, 384>}]} {
    %c0 = arith.constant 0 : index
    %c0_0 = arith.constant 0 : index
    %c0_1 = arith.constant 0 : index
    %0 = vector.load %arg2[%c0, %c0_0, %c0_1] : memref<6x8x384xf32, #tpu.memory_space<vmem>>, vector<6x8x384xf32>
    %cst = arith.constant dense<0.000000e+00> : vector<6x384xf32>
    %1 = vector.multi_reduction <add>, %0, %cst [1] : vector<6x8x384xf32> to vector<6x384xf32>
    %2 = vector.shape_cast %1 : vector<6x384xf32> to vector<6x1x384xf32>
    %cst_2 = arith.constant 1.250000e-01 : f32
    %3 = vector.broadcast %cst_2 : f32 to vector<6x1x384xf32>
    %4 = arith.mulf %2, %3 : vector<6x1x384xf32>
    %5 = vector.broadcast %4 : vector<6x1x384xf32> to vector<6x8x384xf32>
    %6 = arith.subf %0, %5 : vector<6x8x384xf32>
    %7 = arith.mulf %6, %6 : vector<6x8x384xf32>
    %cst_3 = arith.constant dense<0.000000e+00> : vector<6x384xf32>
    %8 = vector.multi_reduction <add>, %7, %cst_3 [1] : vector<6x8x384xf32> to vector<6x384xf32>
    %9 = vector.shape_cast %8 : vector<6x384xf32> to vector<6x1x384xf32>
    %cst_4 = arith.constant 0.142857149 : f32
    %10 = vector.broadcast %cst_4 : f32 to vector<6x1x384xf32>
    %11 = arith.mulf %9, %10 : vector<6x1x384xf32>
    %cst_5 = arith.constant 9.99999993E-9 : f32
    %12 = vector.broadcast %cst_5 : f32 to vector<6x1x384xf32>
    %13 = arith.addf %11, %12 : vector<6x1x384xf32>
    %14 = math.rsqrt %13 : vector<6x1x384xf32>
    %c0_6 = arith.constant 0 : index
    %c0_7 = arith.constant 0 : index
    %15 = vector.load %arg3[%c0_6, %c0_7] : memref<1x384xf32, #tpu.memory_space<vmem>>, vector<1x384xf32>
    %16 = vector.shape_cast %15 : vector<1x384xf32> to vector<1x1x384xf32>
    %17 = vector.broadcast %16 : vector<1x1x384xf32> to vector<6x1x384xf32>
    %18 = arith.mulf %14, %17 : vector<6x1x384xf32>
    %c0_8 = arith.constant 0 : index
    %c0_9 = arith.constant 0 : index
    %19 = vector.load %arg4[%c0_8, %c0_9] : memref<1x384xf32, #tpu.memory_space<vmem>>, vector<1x384xf32>
    %20 = arith.mulf %4, %18 : vector<6x1x384xf32>
    %21 = vector.shape_cast %19 : vector<1x384xf32> to vector<1x1x384xf32>
    %22 = vector.broadcast %21 : vector<1x1x384xf32> to vector<6x1x384xf32>
    %23 = arith.subf %22, %20 : vector<6x1x384xf32>
    %24 = vector.broadcast %18 : vector<6x1x384xf32> to vector<6x8x384xf32>
    %25 = arith.mulf %0, %24 : vector<6x8x384xf32>
    %26 = vector.broadcast %23 : vector<6x1x384xf32> to vector<6x8x384xf32>
    %27 = arith.addf %25, %26 : vector<6x8x384xf32>
    %c0_10 = arith.constant 0 : index
    %c0_11 = arith.constant 0 : index
    %c0_12 = arith.constant 0 : index
    %28 = vector.load %arg5[%c0_10, %c0_11, %c0_12] : memref<6x8x384xf32, #tpu.memory_space<vmem>>, vector<6x8x384xf32>
    tpu.vector_store %arg5[%c0_10, %c0_11, %c0_12], %27 {strides = array<i32>} : memref<6x8x384xf32, #tpu.memory_space<vmem>>, vector<6x8x384xf32>,
    return
  }
  func.func @transform_0(%arg0: i32, %arg1: i32) -> (i32, i32, i32) {
    %c0_i32 = arith.constant 0 : i32
    %c0_i32_0 = arith.constant 0 : i32
    return %arg1, %c0_i32, %arg0 : i32, i32, i32
  }
  func.func @transform_1(%arg0: i32, %arg1: i32) -> (i32, i32) {
    %c0_i32 = arith.constant 0 : i32
    %c0_i32_0 = arith.constant 0 : i32
    return %c0_i32, %arg0 : i32, i32
  }
  func.func @transform_2(%arg0: i32, %arg1: i32) -> (i32, i32) {
    %c0_i32 = arith.constant 0 : i32
    %c0_i32_0 = arith.constant 0 : i32
    return %c0_i32, %arg0 : i32, i32
  }
  func.func @transform_3(%arg0: i32, %arg1: i32) -> (i32, i32, i32) {
    %c0_i32 = arith.constant 0 : i32
    %c0_i32_0 = arith.constant 0 : i32
    return %arg1, %c0_i32, %arg0 : i32, i32, i32
  }
}

</mosaic_0001>

<llo_original>
// kernel: tpu_custom_call.1
$region0: #{tpu_custom_call.1}
  #allocation0 [shape = 'u32[]', space=smem, size = 0x4, offset = 0x4, fixed_abs, tag = 'smem constant byte address 0x4 - core index']
  #allocation1 [shape = 'u32[144,128]{1,0:T(1,128)}', space=vmem, size = 0x12000, scoped, tag = 'internal scratch']
  %s0 = inlined_call_operand.hbm [shape: f32[6,8,384], index: 0, kind: input, shape index: {}]
  %s1 = inlined_call_operand.hbm [shape: f32[1,384], index: 1, kind: input, shape index: {}]
  %s2 = inlined_call_operand.vmem [shape: f32[1,384], index: 2, kind: input, shape index: {}]
  %s3 = inlined_call_operand.hbm [shape: f32[6,8,384], index: 3, kind: output, shape index: {}]
  %s4 = sld [smem:[#allocation0]]
  $region30: #{tpu_custom_call.1} parent=0
    _
  %s6 = ssub.s32 1, %s4
  %s7 = scalar_select 0, %s6, %s4
  $region1: #{tpu_custom_call.1} parent=0
    #allocation2 [shape = 'u8[73728]{0}', space=vmem, size = 0x12000, scoped, tag = 'input window, operand 0, single buffered']
    #allocation3 [shape = 's32[1]{0}', space=sflag, size = 0x4, scoped, tag = 'scoped memory for tpu_custom_call.1']
    #allocation4 [shape = 's32[1]{0}', space=sflag, size = 0x4, scoped, tag = 'scoped memory for tpu_custom_call.1']
    #allocation5 [shape = 'u8[1536]{0}', space=vmem, size = 0x800, scoped, tag = 'input window, operand 1, single buffered']
    #allocation6 [shape = 's32[1]{0}', space=sflag, size = 0x4, scoped, tag = 'scoped memory for tpu_custom_call.1']
    #allocation7 [shape = 'u8[73728]{0}', space=vmem, size = 0x12000, scoped, tag = 'output window, operand 0, single buffered']
    %8 = vsyncpa [#allocation3], 0
    %9 = vsyncpa [#allocation6], 0
    %10 = vsyncpa [#allocation4], 0
    // Predicated region
    $region2: #{tpu_custom_call.1} parent=1 // pred_check
      _
    $region3: #{tpu_custom_call.1} parent=1 // pred_check_branch
      %12 = sbr.rel (0) target = $region5
    $region4: #{tpu_custom_call.1} parent=1 // pred_region
      %s14 = ssub.s32 2304, 2304
      %15 = vsyncadd [#allocation3], %s14
      %s16 = sshll.u32 [#allocation2], 4
      %s17 = int_to_ptr.vmem [resolvable:$true] %s16
      %22 = dma.hbm_to_vmem [thread:$0]  %s0, 2304, %s17, [#allocation3], 384, 384, 24
    $region5: #{tpu_custom_call.1} parent=1 // pred_fallthru
      _
    // Predicated region
    $region6: #{tpu_custom_call.1} parent=1 // pred_check
      _
    $region7: #{tpu_custom_call.1} parent=1 // pred_check_branch
      %24 = sbr.rel (0) target = $region9
    $region8: #{tpu_custom_call.1} parent=1 // pred_region
      %s26 = ssub.s32 48, 48
      %27 = vsyncadd [#allocation6], %s26
      %s29 = sshll.u32 [#allocation5], 4
      %s30 = int_to_ptr.vmem [resolvable:$true] %s29
      %32 = dma.hbm_to_vmem [thread:$0]  %s1, 48, %s30, [#allocation6]
    $region9: #{tpu_custom_call.1} parent=1 // pred_fallthru
      _
    // Predicated region
    $region10: #{tpu_custom_call.1} parent=1 // pred_check
      _
    $region11: #{tpu_custom_call.1} parent=1 // pred_check_branch
      %34 = sbr.rel (0) target = $region13
    $region12: #{tpu_custom_call.1} parent=1 // pred_region
      _
    $region13: #{tpu_custom_call.1} parent=1 // pred_fallthru
      _
    // Predicated region
    $region14: #{tpu_custom_call.1} parent=1 // pred_check
      _
    $region15: #{tpu_custom_call.1} parent=1 // pred_check_branch
      %36 = sbr.rel (0) target = $region17
    $region16: #{tpu_custom_call.1} parent=1 // pred_region
      %37 = dma.done [#allocation3], 2304
    $region17: #{tpu_custom_call.1} parent=1 // pred_fallthru
      _
    // Predicated region
    $region18: #{tpu_custom_call.1} parent=1 // pred_check
      _
    $region19: #{tpu_custom_call.1} parent=1 // pred_check_branch
      %39 = sbr.rel (0) target = $region21
    $region20: #{tpu_custom_call.1} parent=1 // pred_region
      %40 = dma.done [#allocation6], 48
    $region21: #{tpu_custom_call.1} parent=1 // pred_fallthru
      _
    %v41 = vld [vmem:[#allocation2] sm:$0xff]
    %v42 = vld [vmem:[#allocation2 + $0x8] sm:$0xff]
    %v43 = vld [vmem:[#allocation2 + $0x10] sm:$0xff]
    %v44 = vld [vmem:[#allocation2 + $0x18] sm:$0xff]
    %v45 = vld [vmem:[#allocation2 + $0x20] sm:$0xff]
    %v46 = vld [vmem:[#allocation2 + $0x28] sm:$0xff]
    %v47 = vld [vmem:[#allocation2 + $0x30] sm:$0xff]
    %v48 = vld [vmem:[#allocation2 + $0x38] sm:$0xff]
    %v49 = vld [vmem:[#allocation2 + $0x40] sm:$0xff]
    %v50 = vld [vmem:[#allocation2 + $0x48] sm:$0xff]
    %v51 = vld [vmem:[#allocation2 + $0x50] sm:$0xff]
    %v52 = vld [vmem:[#allocation2 + $0x58] sm:$0xff]
    %v53 = vld [vmem:[#allocation2 + $0x60] sm:$0xff]
    %v54 = vld [vmem:[#allocation2 + $0x68] sm:$0xff]
    %v55 = vld [vmem:[#allocation2 + $0x70] sm:$0xff]
    %v56 = vld [vmem:[#allocation2 + $0x78] sm:$0xff]
    %v57 = vld [vmem:[#allocation2 + $0x80] sm:$0xff]
    %v58 = vld [vmem:[#allocation2 + $0x88] sm:$0xff]
    %v59 = vrot.slane %v41, 4
    %v60 = vadd.f32 %v41, %v59
    %v61 = vrot.slane %v60, 2
    %v62 = vadd.f32 %v60, %v61
    %v63 = vrot.slane %v62, 1
    %v64 = vadd.f32 %v62, %v63
    %v65 = vrot.slane %v42, 4
    %v66 = vadd.f32 %v42, %v65
    %v67 = vrot.slane %v66, 2
    %v68 = vadd.f32 %v66, %v67
    %v69 = vrot.slane %v68, 1
    %v70 = vadd.f32 %v68, %v69
    %v71 = vrot.slane %v43, 4
    %v72 = vadd.f32 %v43, %v71
    %v73 = vrot.slane %v72, 2
    %v74 = vadd.f32 %v72, %v73
    %v75 = vrot.slane %v74, 1
    %v76 = vadd.f32 %v74, %v75
    %v77 = vrot.slane %v44, 4
    %v78 = vadd.f32 %v44, %v77
    %v79 = vrot.slane %v78, 2
    %v80 = vadd.f32 %v78, %v79
    %v81 = vrot.slane %v80, 1
    %v82 = vadd.f32 %v80, %v81
    %v83 = vrot.slane %v45, 4
    %v84 = vadd.f32 %v45, %v83
    %v85 = vrot.slane %v84, 2
    %v86 = vadd.f32 %v84, %v85
    %v87 = vrot.slane %v86, 1
    %v88 = vadd.f32 %v86, %v87
    %v89 = vrot.slane %v46, 4
    %v90 = vadd.f32 %v46, %v89
    %v91 = vrot.slane %v90, 2
    %v92 = vadd.f32 %v90, %v91
    %v93 = vrot.slane %v92, 1
    %v94 = vadd.f32 %v92, %v93
    %v95 = vrot.slane %v47, 4
    %v96 = vadd.f32 %v47, %v95
    %v97 = vrot.slane %v96, 2
    %v98 = vadd.f32 %v96, %v97
    %v99 = vrot.slane %v98, 1
    %v100 = vadd.f32 %v98, %v99
    %v101 = vrot.slane %v48, 4
    %v102 = vadd.f32 %v48, %v101
    %v103 = vrot.slane %v102, 2
    %v104 = vadd.f32 %v102, %v103
    %v105 = vrot.slane %v104, 1
    %v106 = vadd.f32 %v104, %v105
    %v107 = vrot.slane %v49, 4
    %v108 = vadd.f32 %v49, %v107
    %v109 = vrot.slane %v108, 2
    %v110 = vadd.f32 %v108, %v109
    %v111 = vrot.slane %v110, 1
    %v112 = vadd.f32 %v110, %v111
    %v113 = vrot.slane %v50, 4
    %v114 = vadd.f32 %v50, %v113
    %v115 = vrot.slane %v114, 2
    %v116 = vadd.f32 %v114, %v115
    %v117 = vrot.slane %v116, 1
    %v118 = vadd.f32 %v116, %v117
    %v119 = vrot.slane %v51, 4
    %v120 = vadd.f32 %v51, %v119
    %v121 = vrot.slane %v120, 2
    %v122 = vadd.f32 %v120, %v121
    %v123 = vrot.slane %v122, 1
    %v124 = vadd.f32 %v122, %v123
    %v125 = vrot.slane %v52, 4
    %v126 = vadd.f32 %v52, %v125
    %v127 = vrot.slane %v126, 2
    %v128 = vadd.f32 %v126, %v127
    %v129 = vrot.slane %v128, 1
    %v130 = vadd.f32 %v128, %v129
    %v131 = vrot.slane %v53, 4
    %v132 = vadd.f32 %v53, %v131
    %v133 = vrot.slane %v132, 2
    %v134 = vadd.f32 %v132, %v133
    %v135 = vrot.slane %v134, 1
    %v136 = vadd.f32 %v134, %v135
    %v137 = vrot.slane %v54, 4
    %v138 = vadd.f32 %v54, %v137
    %v139 = vrot.slane %v138, 2
    %v140 = vadd.f32 %v138, %v139
    %v141 = vrot.slane %v140, 1
    %v142 = vadd.f32 %v140, %v141
    %v143 = vrot.slane %v55, 4
    %v144 = vadd.f32 %v55, %v143
    %v145 = vrot.slane %v144, 2
    %v146 = vadd.f32 %v144, %v145
    %v147 = vrot.slane %v146, 1
    %v148 = vadd.f32 %v146, %v147
    %v149 = vrot.slane %v56, 4
    %v150 = vadd.f32 %v56, %v149
    %v151 = vrot.slane %v150, 2
    %v152 = vadd.f32 %v150, %v151
    %v153 = vrot.slane %v152, 1
    %v154 = vadd.f32 %v152, %v153
    %v155 = vrot.slane %v57, 4
    %v156 = vadd.f32 %v57, %v155
    %v157 = vrot.slane %v156, 2
    %v158 = vadd.f32 %v156, %v157
    %v159 = vrot.slane %v158, 1
    %v160 = vadd.f32 %v158, %v159
    %v161 = vrot.slane %v58, 4
    %v162 = vadd.f32 %v58, %v161
    %v163 = vrot.slane %v162, 2
    %v164 = vadd.f32 %v162, %v163
    %v165 = vrot.slane %v164, 1
    %v166 = vadd.f32 %v164, %v165
    %v167 = vmul.f32 %v64, 0.125
    %v168 = vmul.f32 %v70, 0.125
    %v169 = vmul.f32 %v76, 0.125
    %v170 = vmul.f32 %v82, 0.125
    %v171 = vmul.f32 %v88, 0.125
    %v172 = vmul.f32 %v94, 0.125
    %v173 = vmul.f32 %v100, 0.125
    %v174 = vmul.f32 %v106, 0.125
    %v175 = vmul.f32 %v112, 0.125
    %v176 = vmul.f32 %v118, 0.125
    %v177 = vmul.f32 %v124, 0.125
    %v178 = vmul.f32 %v130, 0.125
    %v179 = vmul.f32 %v136, 0.125
    %v180 = vmul.f32 %v142, 0.125
    %v181 = vmul.f32 %v148, 0.125
    %v182 = vmul.f32 %v154, 0.125
    %v183 = vmul.f32 %v160, 0.125
    %v184 = vmul.f32 %v166, 0.125
    %v185 = vsub.f32 %v41, %v167
    %v186 = vsub.f32 %v42, %v168
    %v187 = vsub.f32 %v43, %v169
    %v188 = vsub.f32 %v44, %v170
    %v189 = vsub.f32 %v45, %v171
    %v190 = vsub.f32 %v46, %v172
    %v191 = vsub.f32 %v47, %v173
    %v192 = vsub.f32 %v48, %v174
    %v193 = vsub.f32 %v49, %v175
    %v194 = vsub.f32 %v50, %v176
    %v195 = vsub.f32 %v51, %v177
    %v196 = vsub.f32 %v52, %v178
    %v197 = vsub.f32 %v53, %v179
    %v198 = vsub.f32 %v54, %v180
    %v199 = vsub.f32 %v55, %v181
    %v200 = vsub.f32 %v56, %v182
    %v201 = vsub.f32 %v57, %v183
    %v202 = vsub.f32 %v58, %v184
    %v203 = vmul.f32 %v185, %v185
    %v204 = vmul.f32 %v186, %v186
    %v205 = vmul.f32 %v187, %v187
    %v206 = vmul.f32 %v188, %v188
    %v207 = vmul.f32 %v189, %v189
    %v208 = vmul.f32 %v190, %v190
    %v209 = vmul.f32 %v191, %v191
    %v210 = vmul.f32 %v192, %v192
    %v211 = vmul.f32 %v193, %v193
    %v212 = vmul.f32 %v194, %v194
    %v213 = vmul.f32 %v195, %v195
    %v214 = vmul.f32 %v196, %v196
    %v215 = vmul.f32 %v197, %v197
    %v216 = vmul.f32 %v198, %v198
    %v217 = vmul.f32 %v199, %v199
    %v218 = vmul.f32 %v200, %v200
    %v219 = vmul.f32 %v201, %v201
    %v220 = vmul.f32 %v202, %v202
    %v221 = vrot.slane %v203, 4
    %v222 = vadd.f32 %v203, %v221
    %v223 = vrot.slane %v222, 2
    %v224 = vadd.f32 %v222, %v223
    %v225 = vrot.slane %v224, 1
    %v226 = vadd.f32 %v224, %v225
    %v227 = vrot.slane %v204, 4
    %v228 = vadd.f32 %v204, %v227
    %v229 = vrot.slane %v228, 2
    %v230 = vadd.f32 %v228, %v229
    %v231 = vrot.slane %v230, 1
    %v232 = vadd.f32 %v230, %v231
    %v233 = vrot.slane %v205, 4
    %v234 = vadd.f32 %v205, %v233
    %v235 = vrot.slane %v234, 2
    %v236 = vadd.f32 %v234, %v235
    %v237 = vrot.slane %v236, 1
    %v238 = vadd.f32 %v236, %v237
    %v239 = vrot.slane %v206, 4
    %v240 = vadd.f32 %v206, %v239
    %v241 = vrot.slane %v240, 2
    %v242 = vadd.f32 %v240, %v241
    %v243 = vrot.slane %v242, 1
    %v244 = vadd.f32 %v242, %v243
    %v245 = vrot.slane %v207, 4
    %v246 = vadd.f32 %v207, %v245
    %v247 = vrot.slane %v246, 2
    %v248 = vadd.f32 %v246, %v247
    %v249 = vrot.slane %v248, 1
    %v250 = vadd.f32 %v248, %v249
    %v251 = vrot.slane %v208, 4
    %v252 = vadd.f32 %v208, %v251
    %v253 = vrot.slane %v252, 2
    %v254 = vadd.f32 %v252, %v253
    %v255 = vrot.slane %v254, 1
    %v256 = vadd.f32 %v254, %v255
    %v257 = vrot.slane %v209, 4
    %v258 = vadd.f32 %v209, %v257
    %v259 = vrot.slane %v258, 2
    %v260 = vadd.f32 %v258, %v259
    %v261 = vrot.slane %v260, 1
    %v262 = vadd.f32 %v260, %v261
    %v263 = vrot.slane %v210, 4
    %v264 = vadd.f32 %v210, %v263
    %v265 = vrot.slane %v264, 2
    %v266 = vadd.f32 %v264, %v265
    %v267 = vrot.slane %v266, 1
    %v268 = vadd.f32 %v266, %v267
    %v269 = vrot.slane %v211, 4
    %v270 = vadd.f32 %v211, %v269
    %v271 = vrot.slane %v270, 2
    %v272 = vadd.f32 %v270, %v271
    %v273 = vrot.slane %v272, 1
    %v274 = vadd.f32 %v272, %v273
    %v275 = vrot.slane %v212, 4
    %v276 = vadd.f32 %v212, %v275
    %v277 = vrot.slane %v276, 2
    %v278 = vadd.f32 %v276, %v277
    %v279 = vrot.slane %v278, 1
    %v280 = vadd.f32 %v278, %v279
    %v281 = vrot.slane %v213, 4
    %v282 = vadd.f32 %v213, %v281
    %v283 = vrot.slane %v282, 2
    %v284 = vadd.f32 %v282, %v283
    %v285 = vrot.slane %v284, 1
    %v286 = vadd.f32 %v284, %v285
    %v287 = vrot.slane %v214, 4
    %v288 = vadd.f32 %v214, %v287
    %v289 = vrot.slane %v288, 2
    %v290 = vadd.f32 %v288, %v289
    %v291 = vrot.slane %v290, 1
    %v292 = vadd.f32 %v290, %v291
    %v293 = vrot.slane %v215, 4
    %v294 = vadd.f32 %v215, %v293
    %v295 = vrot.slane %v294, 2
    %v296 = vadd.f32 %v294, %v295
    %v297 = vrot.slane %v296, 1
    %v298 = vadd.f32 %v296, %v297
    %v299 = vrot.slane %v216, 4
    %v300 = vadd.f32 %v216, %v299
    %v301 = vrot.slane %v300, 2
    %v302 = vadd.f32 %v300, %v301
    %v303 = vrot.slane %v302, 1
    %v304 = vadd.f32 %v302, %v303
    %v305 = vrot.slane %v217, 4
    %v306 = vadd.f32 %v217, %v305
    %v307 = vrot.slane %v306, 2
    %v308 = vadd.f32 %v306, %v307
    %v309 = vrot.slane %v308, 1
    %v310 = vadd.f32 %v308, %v309
    %v311 = vrot.slane %v218, 4
    %v312 = vadd.f32 %v218, %v311
    %v313 = vrot.slane %v312, 2
    %v314 = vadd.f32 %v312, %v313
    %v315 = vrot.slane %v314, 1
    %v316 = vadd.f32 %v314, %v315
    %v317 = vrot.slane %v219, 4
    %v318 = vadd.f32 %v219, %v317
    %v319 = vrot.slane %v318, 2
    %v320 = vadd.f32 %v318, %v319
    %v321 = vrot.slane %v320, 1
    %v322 = vadd.f32 %v320, %v321
    %v323 = vrot.slane %v220, 4
    %v324 = vadd.f32 %v220, %v323
    %v325 = vrot.slane %v324, 2
    %v326 = vadd.f32 %v324, %v325
    %v327 = vrot.slane %v326, 1
    %v328 = vadd.f32 %v326, %v327
    %v329 = vmul.f32 %v226, 0.14285715
    %v330 = vmul.f32 %v232, 0.14285715
    %v331 = vmul.f32 %v238, 0.14285715
    %v332 = vmul.f32 %v244, 0.14285715
    %v333 = vmul.f32 %v250, 0.14285715
    %v334 = vmul.f32 %v256, 0.14285715
    %v335 = vmul.f32 %v262, 0.14285715
    %v336 = vmul.f32 %v268, 0.14285715
    %v337 = vmul.f32 %v274, 0.14285715
    %v338 = vmul.f32 %v280, 0.14285715
    %v339 = vmul.f32 %v286, 0.14285715
    %v340 = vmul.f32 %v292, 0.14285715
    %v341 = vmul.f32 %v298, 0.14285715
    %v342 = vmul.f32 %v304, 0.14285715
    %v343 = vmul.f32 %v310, 0.14285715
    %v344 = vmul.f32 %v316, 0.14285715
    %v345 = vmul.f32 %v322, 0.14285715
    %v346 = vmul.f32 %v328, 0.14285715
    %v347 = vadd.f32 %v329, 1e-08
    %v348 = vadd.f32 %v330, 1e-08
    %v349 = vadd.f32 %v331, 1e-08
    %v350 = vadd.f32 %v332, 1e-08
    %v351 = vadd.f32 %v333, 1e-08
    %v352 = vadd.f32 %v334, 1e-08
    %v353 = vadd.f32 %v335, 1e-08
    %v354 = vadd.f32 %v336, 1e-08
    %v355 = vadd.f32 %v337, 1e-08
    %v356 = vadd.f32 %v338, 1e-08
    %v357 = vadd.f32 %v339, 1e-08
    %v358 = vadd.f32 %v340, 1e-08
    %v359 = vadd.f32 %v341, 1e-08
    %v360 = vadd.f32 %v342, 1e-08
    %v361 = vadd.f32 %v343, 1e-08
    %v362 = vadd.f32 %v344, 1e-08
    %v363 = vadd.f32 %v345, 1e-08
    %v364 = vadd.f32 %v346, 1e-08
    %v365 = vrsqrt.pop %v347
    %v366 = vrsqrt.pop %v348
    %v367 = vrsqrt.pop %v349
    %v368 = vrsqrt.pop %v350
    %v369 = vrsqrt.pop %v351
    %v370 = vrsqrt.pop %v352
    %v371 = vrsqrt.pop %v353
    %v372 = vrsqrt.pop %v354
    %v373 = vrsqrt.pop %v355
    %v374 = vrsqrt.pop %v356
    %v375 = vrsqrt.pop %v357
    %v376 = vrsqrt.pop %v358
    %v377 = vrsqrt.pop %v359
    %v378 = vrsqrt.pop %v360
    %v379 = vrsqrt.pop %v361
    %v380 = vrsqrt.pop %v362
    %v381 = vrsqrt.pop %v363
    %v382 = vrsqrt.pop %v364
    %v383 = vld [vmem:[#allocation5] sm:$0x7]
    %v385 = vlaneseq
    %v386 = vshrl.u32 %v385, 7
    %v387 = vsub.s32 0, %v386
    %v388 = vrot.slane %v383, %v387
    %v389 = vlaneseq
    %v390 = vshrl.u32 %v389, 7
    %v391 = vsub.s32 1, %v390
    %v392 = vrot.slane %v383, %v391
    %v393 = vlaneseq
    %v394 = vshrl.u32 %v393, 7
    %v395 = vsub.s32 2, %v394
    %v396 = vrot.slane %v383, %v395
    %v400 = vmul.f32 %v365, %v388
    %v401 = vmul.f32 %v366, %v392
    %v402 = vmul.f32 %v367, %v396
    %v403 = vmul.f32 %v368, %v388
    %v404 = vmul.f32 %v369, %v392
    %v405 = vmul.f32 %v370, %v396
    %v406 = vmul.f32 %v371, %v388
    %v407 = vmul.f32 %v372, %v392
    %v408 = vmul.f32 %v373, %v396
    %v409 = vmul.f32 %v374, %v388
    %v410 = vmul.f32 %v375, %v392
    %v411 = vmul.f32 %v376, %v396
    %v412 = vmul.f32 %v377, %v388
    %v413 = vmul.f32 %v378, %v392
    %v414 = vmul.f32 %v379, %v396
    %v415 = vmul.f32 %v380, %v388
    %v416 = vmul.f32 %v381, %v392
    %v417 = vmul.f32 %v382, %v396
    %v418 = vld [vmem:[%s2] sm:$0x7]
    %v419 = vmul.f32 %v167, %v400
    %v420 = vmul.f32 %v168, %v401
    %v421 = vmul.f32 %v169, %v402
    %v422 = vmul.f32 %v170, %v403
    %v423 = vmul.f32 %v171, %v404
    %v424 = vmul.f32 %v172, %v405
    %v425 = vmul.f32 %v173, %v406
    %v426 = vmul.f32 %v174, %v407
    %v427 = vmul.f32 %v175, %v408
    %v428 = vmul.f32 %v176, %v409
    %v429 = vmul.f32 %v177, %v410
    %v430 = vmul.f32 %v178, %v411
    %v431 = vmul.f32 %v179, %v412
    %v432 = vmul.f32 %v180, %v413
    %v433 = vmul.f32 %v181, %v414
    %v434 = vmul.f32 %v182, %v415
    %v435 = vmul.f32 %v183, %v416
    %v436 = vmul.f32 %v184, %v417
    %v455 = vcombine.low %v419, %v420
    %v457 = vunpack.c.l.s4 1966171168
    %v458 = vunpack.c.0.s8 %v457
    %v459 = vlaneseq
    %v460 = vshrl.u32 %v459, 7
    %v461 = vsub.s32 %v458, %v460
    %v462 = vrot.slane %v455, %v461
    %v464 = vunpack.c.l.s4 1966171168
    %v465 = vunpack.c.0.s8 %v464
    %v466 = vlaneseq
    %v467 = vshrl.u32 %v466, 7
    %v468 = vsub.s32 %v465, %v467
    %v469 = vrot.slane %v421, %v468
    %v470 = vcombine.low %v462, %v469
    %v472 = vunpack.c.l.s4 1966171168
    %v473 = vunpack.c.0.s8 %v472
    %v474 = vlaneseq
    %v475 = vshrl.u32 %v474, 7
    %v476 = vsub.s32 %v473, %v475
    %v477 = vrot.slane %v470, %v476
    %v478 = vcombine.low %v422, %v423
    %v480 = vunpack.c.l.s4 1966171168
    %v481 = vunpack.c.0.s8 %v480
    %v482 = vlaneseq
    %v483 = vshrl.u32 %v482, 7
    %v484 = vsub.s32 %v481, %v483
    %v485 = vrot.slane %v478, %v484
    %v487 = vunpack.c.l.s4 1966171168
    %v488 = vunpack.c.0.s8 %v487
    %v489 = vlaneseq
    %v490 = vshrl.u32 %v489, 7
    %v491 = vsub.s32 %v488, %v490
    %v492 = vrot.slane %v424, %v491
    %v493 = vcombine.low %v485, %v492
    %v495 = vunpack.c.l.s4 1966171168
    %v496 = vunpack.c.0.s8 %v495
    %v497 = vlaneseq
    %v498 = vshrl.u32 %v497, 7
    %v499 = vsub.s32 %v496, %v498
    %v500 = vrot.slane %v493, %v499
    %v501 = vcombine.low %v425, %v426
    %v503 = vunpack.c.l.s4 1966171168
    %v504 = vunpack.c.0.s8 %v503
    %v505 = vlaneseq
    %v506 = vshrl.u32 %v505, 7
    %v507 = vsub.s32 %v504, %v506
    %v508 = vrot.slane %v501, %v507
    %v510 = vunpack.c.l.s4 1966171168
    %v511 = vunpack.c.0.s8 %v510
    %v512 = vlaneseq
    %v513 = vshrl.u32 %v512, 7
    %v514 = vsub.s32 %v511, %v513
    %v515 = vrot.slane %v427, %v514
    %v516 = vcombine.low %v508, %v515
    %v518 = vunpack.c.l.s4 1966171168
    %v519 = vunpack.c.0.s8 %v518
    %v520 = vlaneseq
    %v521 = vshrl.u32 %v520, 7
    %v522 = vsub.s32 %v519, %v521
    %v523 = vrot.slane %v516, %v522
    %v524 = vcombine.low %v428, %v429
    %v526 = vunpack.c.l.s4 1966171168
    %v527 = vunpack.c.0.s8 %v526
    %v528 = vlaneseq
    %v529 = vshrl.u32 %v528, 7
    %v530 = vsub.s32 %v527, %v529
    %v531 = vrot.slane %v524, %v530
    %v533 = vunpack.c.l.s4 1966171168
    %v534 = vunpack.c.0.s8 %v533
    %v535 = vlaneseq
    %v536 = vshrl.u32 %v535, 7
    %v537 = vsub.s32 %v534, %v536
    %v538 = vrot.slane %v430, %v537
    %v539 = vcombine.low %v531, %v538
    %v541 = vunpack.c.l.s4 1966171168
    %v542 = vunpack.c.0.s8 %v541
    %v543 = vlaneseq
    %v544 = vshrl.u32 %v543, 7
    %v545 = vsub.s32 %v542, %v544
    %v546 = vrot.slane %v539, %v545
    %v547 = vcombine.low %v431, %v432
    %v549 = vunpack.c.l.s4 1966171168
    %v550 = vunpack.c.0.s8 %v549
    %v551 = vlaneseq
    %v552 = vshrl.u32 %v551, 7
    %v553 = vsub.s32 %v550, %v552
    %v554 = vrot.slane %v547, %v553
    %v556 = vunpack.c.l.s4 1966171168
    %v557 = vunpack.c.0.s8 %v556
    %v558 = vlaneseq
    %v559 = vshrl.u32 %v558, 7
    %v560 = vsub.s32 %v557, %v559
    %v561 = vrot.slane %v433, %v560
    %v562 = vcombine.low %v554, %v561
    %v564 = vunpack.c.l.s4 1966171168
    %v565 = vunpack.c.0.s8 %v564
    %v566 = vlaneseq
    %v567 = vshrl.u32 %v566, 7
    %v568 = vsub.s32 %v565, %v567
    %v569 = vrot.slane %v562, %v568
    %v570 = vcombine.low %v434, %v435
    %v572 = vunpack.c.l.s4 1966171168
    %v573 = vunpack.c.0.s8 %v572
    %v574 = vlaneseq
    %v575 = vshrl.u32 %v574, 7
    %v576 = vsub.s32 %v573, %v575
    %v577 = vrot.slane %v570, %v576
    %v579 = vunpack.c.l.s4 1966171168
    %v580 = vunpack.c.0.s8 %v579
    %v581 = vlaneseq
    %v582 = vshrl.u32 %v581, 7
    %v583 = vsub.s32 %v580, %v582
    %v584 = vrot.slane %v436, %v583
    %v585 = vcombine.low %v577, %v584
    %v587 = vunpack.c.l.s4 1966171168
    %v588 = vunpack.c.0.s8 %v587
    %v589 = vlaneseq
    %v590 = vshrl.u32 %v589, 7
    %v591 = vsub.s32 %v588, %v590
    %v592 = vrot.slane %v585, %v591
    %v599 = vsub.f32 %v418, %v477
    %v600 = vsub.f32 %v418, %v500
    %v601 = vsub.f32 %v418, %v523
    %v602 = vsub.f32 %v418, %v546
    %v603 = vsub.f32 %v418, %v569
    %v604 = vsub.f32 %v418, %v592
    %v605 = vlaneseq
    %v606 = vshrl.u32 %v605, 7
    %v607 = vsub.s32 0, %v606
    %v608 = vrot.slane %v400, %v607
    %v609 = vlaneseq
    %v610 = vshrl.u32 %v609, 7
    %v611 = vsub.s32 0, %v610
    %v612 = vrot.slane %v401, %v611
    %v613 = vlaneseq
    %v614 = vshrl.u32 %v613, 7
    %v615 = vsub.s32 0, %v614
    %v616 = vrot.slane %v402, %v615
    %v617 = vlaneseq
    %v618 = vshrl.u32 %v617, 7
    %v619 = vsub.s32 0, %v618
    %v620 = vrot.slane %v403, %v619
    %v621 = vlaneseq
    %v622 = vshrl.u32 %v621, 7
    %v623 = vsub.s32 0, %v622
    %v624 = vrot.slane %v404, %v623
    %v625 = vlaneseq
    %v626 = vshrl.u32 %v625, 7
    %v627 = vsub.s32 0, %v626
    %v628 = vrot.slane %v405, %v627
    %v629 = vlaneseq
    %v630 = vshrl.u32 %v629, 7
    %v631 = vsub.s32 0, %v630
    %v632 = vrot.slane %v406, %v631
    %v633 = vlaneseq
    %v634 = vshrl.u32 %v633, 7
    %v635 = vsub.s32 0, %v634
    %v636 = vrot.slane %v407, %v635
    %v637 = vlaneseq
    %v638 = vshrl.u32 %v637, 7
    %v639 = vsub.s32 0, %v638
    %v640 = vrot.slane %v408, %v639
    %v641 = vlaneseq
    %v642 = vshrl.u32 %v641, 7
    %v643 = vsub.s32 0, %v642
    %v644 = vrot.slane %v409, %v643
    %v645 = vlaneseq
    %v646 = vshrl.u32 %v645, 7
    %v647 = vsub.s32 0, %v646
    %v648 = vrot.slane %v410, %v647
    %v649 = vlaneseq
    %v650 = vshrl.u32 %v649, 7
    %v651 = vsub.s32 0, %v650
    %v652 = vrot.slane %v411, %v651
    %v653 = vlaneseq
    %v654 = vshrl.u32 %v653, 7
    %v655 = vsub.s32 0, %v654
    %v656 = vrot.slane %v412, %v655
    %v657 = vlaneseq
    %v658 = vshrl.u32 %v657, 7
    %v659 = vsub.s32 0, %v658
    %v660 = vrot.slane %v413, %v659
    %v661 = vlaneseq
    %v662 = vshrl.u32 %v661, 7
    %v663 = vsub.s32 0, %v662
    %v664 = vrot.slane %v414, %v663
    %v665 = vlaneseq
    %v666 = vshrl.u32 %v665, 7
    %v667 = vsub.s32 0, %v666
    %v668 = vrot.slane %v415, %v667
    %v669 = vlaneseq
    %v670 = vshrl.u32 %v669, 7
    %v671 = vsub.s32 0, %v670
    %v672 = vrot.slane %v416, %v671
    %v673 = vlaneseq
    %v674 = vshrl.u32 %v673, 7
    %v675 = vsub.s32 0, %v674
    %v676 = vrot.slane %v417, %v675
    %v677 = vmul.f32 %v41, %v608
    %v678 = vmul.f32 %v42, %v612
    %v679 = vmul.f32 %v43, %v616
    %v680 = vmul.f32 %v44, %v620
    %v681 = vmul.f32 %v45, %v624
    %v682 = vmul.f32 %v46, %v628
    %v683 = vmul.f32 %v47, %v632
    %v684 = vmul.f32 %v48, %v636
    %v685 = vmul.f32 %v49, %v640
    %v686 = vmul.f32 %v50, %v644
    %v687 = vmul.f32 %v51, %v648
    %v688 = vmul.f32 %v52, %v652
    %v689 = vmul.f32 %v53, %v656
    %v690 = vmul.f32 %v54, %v660
    %v691 = vmul.f32 %v55, %v664
    %v692 = vmul.f32 %v56, %v668
    %v693 = vmul.f32 %v57, %v672
    %v694 = vmul.f32 %v58, %v676
    %v701 = vlaneseq
    %v702 = vshrl.u32 %v701, 7
    %v703 = vsub.s32 0, %v702
    %v704 = vrot.slane %v599, %v703
    %v705 = vlaneseq
    %v706 = vshrl.u32 %v705, 7
    %v707 = vsub.s32 1, %v706
    %v708 = vrot.slane %v599, %v707
    %v709 = vlaneseq
    %v710 = vshrl.u32 %v709, 7
    %v711 = vsub.s32 2, %v710
    %v712 = vrot.slane %v599, %v711
    %v713 = vlaneseq
    %v714 = vshrl.u32 %v713, 7
    %v715 = vsub.s32 0, %v714
    %v716 = vrot.slane %v600, %v715
    %v717 = vlaneseq
    %v718 = vshrl.u32 %v717, 7
    %v719 = vsub.s32 1, %v718
    %v720 = vrot.slane %v600, %v719
    %v721 = vlaneseq
    %v722 = vshrl.u32 %v721, 7
    %v723 = vsub.s32 2, %v722
    %v724 = vrot.slane %v600, %v723
    %v725 = vlaneseq
    %v726 = vshrl.u32 %v725, 7
    %v727 = vsub.s32 0, %v726
    %v728 = vrot.slane %v601, %v727
    %v729 = vlaneseq
    %v730 = vshrl.u32 %v729, 7
    %v731 = vsub.s32 1, %v730
    %v732 = vrot.slane %v601, %v731
    %v733 = vlaneseq
    %v734 = vshrl.u32 %v733, 7
    %v735 = vsub.s32 2, %v734
    %v736 = vrot.slane %v601, %v735
    %v737 = vlaneseq
    %v738 = vshrl.u32 %v737, 7
    %v739 = vsub.s32 0, %v738
    %v740 = vrot.slane %v602, %v739
    %v741 = vlaneseq
    %v742 = vshrl.u32 %v741, 7
    %v743 = vsub.s32 1, %v742
    %v744 = vrot.slane %v602, %v743
    %v745 = vlaneseq
    %v746 = vshrl.u32 %v745, 7
    %v747 = vsub.s32 2, %v746
    %v748 = vrot.slane %v602, %v747
    %v749 = vlaneseq
    %v750 = vshrl.u32 %v749, 7
    %v751 = vsub.s32 0, %v750
    %v752 = vrot.slane %v603, %v751
    %v753 = vlaneseq
    %v754 = vshrl.u32 %v753, 7
    %v755 = vsub.s32 1, %v754
    %v756 = vrot.slane %v603, %v755
    %v757 = vlaneseq
    %v758 = vshrl.u32 %v757, 7
    %v759 = vsub.s32 2, %v758
    %v760 = vrot.slane %v603, %v759
    %v761 = vlaneseq
    %v762 = vshrl.u32 %v761, 7
    %v763 = vsub.s32 0, %v762
    %v764 = vrot.slane %v604, %v763
    %v765 = vlaneseq
    %v766 = vshrl.u32 %v765, 7
    %v767 = vsub.s32 1, %v766
    %v768 = vrot.slane %v604, %v767
    %v769 = vlaneseq
    %v770 = vshrl.u32 %v769, 7
    %v771 = vsub.s32 2, %v770
    %v772 = vrot.slane %v604, %v771
    %v791 = vadd.f32 %v677, %v704
    %v792 = vadd.f32 %v678, %v708
    %v793 = vadd.f32 %v679, %v712
    %v794 = vadd.f32 %v680, %v716
    %v795 = vadd.f32 %v681, %v720
    %v796 = vadd.f32 %v682, %v724
    %v797 = vadd.f32 %v683, %v728
    %v798 = vadd.f32 %v684, %v732
    %v799 = vadd.f32 %v685, %v736
    %v800 = vadd.f32 %v686, %v740
    %v801 = vadd.f32 %v687, %v744
    %v802 = vadd.f32 %v688, %v748
    %v803 = vadd.f32 %v689, %v752
    %v804 = vadd.f32 %v690, %v756
    %v805 = vadd.f32 %v691, %v760
    %v806 = vadd.f32 %v692, %v764
    %v807 = vadd.f32 %v693, %v768
    %v808 = vadd.f32 %v694, %v772
    %809 = vst [vmem:[#allocation7] sm:$0xff] %v791
    %810 = vst [vmem:[#allocation7 + $0x8] sm:$0xff] %v792
    %811 = vst [vmem:[#allocation7 + $0x10] sm:$0xff] %v793
    %812 = vst [vmem:[#allocation7 + $0x18] sm:$0xff] %v794
    %813 = vst [vmem:[#allocation7 + $0x20] sm:$0xff] %v795
    %814 = vst [vmem:[#allocation7 + $0x28] sm:$0xff] %v796
    %815 = vst [vmem:[#allocation7 + $0x30] sm:$0xff] %v797
    %816 = vst [vmem:[#allocation7 + $0x38] sm:$0xff] %v798
    %817 = vst [vmem:[#allocation7 + $0x40] sm:$0xff] %v799
    %818 = vst [vmem:[#allocation7 + $0x48] sm:$0xff] %v800
    %819 = vst [vmem:[#allocation7 + $0x50] sm:$0xff] %v801
    %820 = vst [vmem:[#allocation7 + $0x58] sm:$0xff] %v802
    %821 = vst [vmem:[#allocation7 + $0x60] sm:$0xff] %v803
    %822 = vst [vmem:[#allocation7 + $0x68] sm:$0xff] %v804
    %823 = vst [vmem:[#allocation7 + $0x70] sm:$0xff] %v805
    %824 = vst [vmem:[#allocation7 + $0x78] sm:$0xff] %v806
    %825 = vst [vmem:[#allocation7 + $0x80] sm:$0xff] %v807
    %826 = vst [vmem:[#allocation7 + $0x88] sm:$0xff] %v808
    // Predicated region
    $region22: #{tpu_custom_call.1} parent=1 // pred_check
      _
    $region23: #{tpu_custom_call.1} parent=1 // pred_check_branch
      %828 = sbr.rel (0) target = $region25
    $region24: #{tpu_custom_call.1} parent=1 // pred_region
      %s830 = ssub.s32 2304, 2304
      %831 = vsyncadd [#allocation4], %s830
      %s832 = sshll.u32 [#allocation7], 4
      %s833 = int_to_ptr.vmem [resolvable:$true] %s832
      %838 = dma.vmem_to_hbm [thread:$0]  %s833, 2304, %s3, [#allocation4], 384, 384, 24
    $region25: #{tpu_custom_call.1} parent=1 // pred_fallthru
      _
    // Predicated region
    $region26: #{tpu_custom_call.1} parent=1 // pred_check
      _
    $region27: #{tpu_custom_call.1} parent=1 // pred_check_branch
      %840 = sbr.rel (0) target = $region29
    $region28: #{tpu_custom_call.1} parent=1 // pred_region
      %841 = dma.done [#allocation4], 2304
    $region29: #{tpu_custom_call.1} parent=1 // pred_fallthru
      _
    %842 = vsyncpa [#allocation3], 1
    %843 = vsyncpa [#allocation6], 1
    %844 = vsyncpa [#allocation4], 1

</llo_original>
